<compile_context>
chip_gen: v7x
topology: tpu7x:2x2x1
jax: 0.10.0
libtpu: 0.0.40
codegen_flags: <defaults>
</compile_context>

<pallas_src>
import math
from functools import lru_cache

import jax
import jax.numpy as jnp
from jax.experimental import pallas as pl
from jax.experimental.pallas import tpu as pltpu

# physics constants from PhysicsLayer.__init__
_A = 55.83
_B = -2.259
_LOG_A = math.log(_A)
_CLAMP_MIN = 1e-6

# below this element count use the gridless single-block path; larger inputs
# go through the pipelined tiled path so DMA-in / compute / DMA-out overlap.
_TINY_ELEMS = 128 * 1024

_LANE_WIDTHS = (2048, 1024, 512, 256, 128)


def _physics_kernel(dw_ref, nf_ref):
    """Elementwise: nf = exp(b * log(max(dw, 1e-6)) + log(a))."""
    dw = dw_ref[...].astype(jnp.float32)
    dw = jnp.maximum(dw, jnp.float32(_CLAMP_MIN))        # torch.clamp(min=1e-6)
    nf = jnp.exp(jnp.float32(_B) * jnp.log(dw) + jnp.float32(_LOG_A))
    nf_ref[...] = nf.astype(nf_ref.dtype)


@lru_cache(maxsize=None)
def _generation_params():
    """(target block bytes, vmem_limit_bytes) per TPU generation."""
    try:
        kind = jax.devices()[0].device_kind.lower()
    except Exception:
        kind = ""
    if "v7" in kind:
        # 3.2 TB/s HBM, 64 MiB VMEM: 8 MiB blocks cut per-step overhead to ~5%
        # (2 arrays x 2 buffers x 8 MiB = 32 MiB, inside a 48 MiB limit).
        return 8 << 20, 48 * 1024 * 1024
    if "v6" in kind:
        # ~1.4 TB/s HBM, 128 MiB VMEM: 4 MiB blocks, generous limit.
        return 4 << 20, 64 * 1024 * 1024
    # v5e / unknown: 2 MiB blocks are already <7% overhead at ~820 GB/s.
    return 2 << 20, 32 * 1024 * 1024


def _round_up(x, m):
    return -(-x // m) * m


def _pick_width(n):
    """Largest lane-dense width (multiple of 128) that divides n, else None."""
    for w in _LANE_WIDTHS:
        if n % w == 0:
            return w
    return None


def _tiny_slab_shape(n):
    """2-D shape filling both sublanes and lanes when possible."""
    for w in _LANE_WIDTHS:               # prefer rows >= 8: full (8,128) vregs
        if n % w == 0 and n // w >= 8:
            return (n // w, w)
    for w in reversed(_LANE_WIDTHS):     # else at least lane-dense
        if n % w == 0:
            return (n // w, w)
    return (1, n)                        # nothing divides (tiny / ragged tail)


def _run_tiny(flat, out_dtype):
    """Single-block path: no grid, no padding/slicing."""
    n = flat.shape[0]
    slab = flat.reshape(_tiny_slab_shape(n))
    out = pl.pallas_call(
        _physics_kernel,
        out_shape=jax.ShapeDtypeStruct(slab.shape, out_dtype),
    )(slab)
    return out.reshape(n)


def _run_tiled(flat, w, out_dtype):
    """Pipelined 1-D-grid path over a lane-dense (rows, w) slab."""
    n = flat.shape[0]
    rows = n // w
    slab = flat.reshape(rows, w)

    itemsize = jnp.dtype(out_dtype).itemsize
    # dtype-aware sublane alignment: (8,128) f32, (16,128) bf16, (32,128) int8
    row_align = max(8, 32 // itemsize)

    block_bytes, vmem_limit = _generation_params()
    max_block_rows = max(row_align,
                         (block_bytes // (w * itemsize)) // row_align * row_align)

    # at least 2 (preferably even) grid steps so the "parallel" axis can split
    # across both TensorCores on dual-TC chips and prefetch/writeback overlap.
    steps = max(2, pl.cdiv(rows, max_block_rows))
    if steps % 2:
        steps += 1
    block_rows = max(row_align,
                     min(max_block_rows,
                         _round_up(pl.cdiv(rows, steps), row_align)))
    grid = (pl.cdiv(rows, block_rows),)   # ragged last block masked by Pallas

    out = pl.pallas_call(
        _physics_kernel,
        out_shape=jax.ShapeDtypeStruct((rows, w), out_dtype),
        grid=grid,
        in_specs=[pl.BlockSpec((block_rows, w), lambda i: (i, 0))],
        out_specs=pl.BlockSpec((block_rows, w), lambda i: (i, 0)),
        compiler_params=pltpu.CompilerParams(
            dimension_semantics=("parallel",),
            vmem_limit_bytes=vmem_limit,
        ),
    )(slab)
    return out.reshape(n)


def physics_layer(delta_w: jax.Array) -> jax.Array:
    """Pallas-backed equivalent of PhysicsLayer.forward."""
    orig_shape = delta_w.shape
    orig_dtype = delta_w.dtype

    flat = delta_w.reshape(-1)
    n = flat.shape[0]
    if n == 0:
        return delta_w

    # ---- tiny fast path: single block, sublane+lane-dense slab ----
    if n <= _TINY_ELEMS:
        return _run_tiny(flat, orig_dtype).reshape(orig_shape)

    # ---- large path: lane-dense 2-D slab, generation-sized blocks ----
    w = _pick_width(n)
    if w is not None:
        return _run_tiled(flat, w, orig_dtype).reshape(orig_shape)

    # ---- ragged fallback: aligned prefix (tiled) + <128-element tail (tiny),
    #      avoiding a full-array jnp.pad copy ----
    tail = n % 128
    aligned = n - tail
    out_main = _run_tiled(flat[:aligned], _pick_width(aligned), orig_dtype)
    out_tail = _run_tiny(flat[aligned:], orig_dtype)
    return jnp.concatenate([out_main, out_tail]).reshape(orig_shape)


if __name__ == "__main__":
    key = jax.random.PRNGKey(0)
    k_small, k_big, k_ragged = jax.random.split(key, 3)

    def ref_nf(x):
        return _A * jnp.power(jnp.maximum(x, _CLAMP_MIN), _B)

    # small NCHW-shaped dW field -> tiny single-block path ((8,256) slab);
    # includes values below the clamp threshold
    x = jax.random.uniform(k_small, (2, 4, 16, 16), dtype=jnp.float32,
                           minval=-0.5, maxval=2.0)
    nf = jax.block_until_ready(physics_layer(x))
    assert nf.shape == x.shape and nf.dtype == x.dtype
    assert jnp.allclose(nf, ref_nf(x), rtol=1e-4, atol=0.0), "mismatch (small)"

    # larger input -> tiled, pipelined, >=2-step "parallel" grid
    x_big = jax.random.uniform(k_big, (4, 16, 128, 128), dtype=jnp.float32,
                               minval=-0.5, maxval=2.0)
    nf_big = jax.block_until_ready(physics_layer(x_big))
    assert nf_big.shape == x_big.shape
    assert jnp.allclose(nf_big, ref_nf(x_big), rtol=1e-4, atol=0.0), "mismatch (big)"

    # ragged size (> tiny threshold, not a multiple of 128) -> prefix + tail
    x_rag = jax.random.uniform(k_ragged, (128 * 1024 + 37,), dtype=jnp.float32,
                               minval=-0.5, maxval=2.0)
    nf_rag = jax.block_until_ready(physics_layer(x_rag))
    assert nf_rag.shape == x_rag.shape
    assert jnp.allclose(nf_rag, ref_nf(x_rag), rtol=1e-4, atol=0.0), "mismatch (ragged)"

    print("KERNEL_OK")
</pallas_src>

<mosaic_0001>
module attributes {stable_mosaic.version = 11 : i64} {
  func.func @_physics_kernel(%arg0: memref<8x256xf32, #tpu.memory_space<vmem>>, %arg1: memref<8x256xf32, #tpu.memory_space<vmem>>) attributes {dimension_semantics = [], scalar_prefetch = 0 : i64, scratch_operands = 0 : i64, tpu.core_type = #tpu.core_type<tc>} {
    %c0 = arith.constant 0 : index
    %c0_0 = arith.constant 0 : index
    %0 = vector.load %arg0[%c0, %c0_0] : memref<8x256xf32, #tpu.memory_space<vmem>>, vector<8x256xf32>
    %cst = arith.constant 9.99999997E-7 : f32
    %1 = vector.broadcast %cst : f32 to vector<8x256xf32>
    %2 = arith.maximumf %0, %1 : vector<8x256xf32>
    %3 = math.log %2 : vector<8x256xf32>
    %cst_1 = arith.constant -2.259000e+00 : f32
    %4 = vector.broadcast %cst_1 : f32 to vector<8x256xf32>
    %5 = arith.mulf %4, %3 : vector<8x256xf32>
    %cst_2 = arith.constant 4.02231121 : f32
    %6 = vector.broadcast %cst_2 : f32 to vector<8x256xf32>
    %7 = arith.addf %5, %6 : vector<8x256xf32>
    %8 = math.exp %7 : vector<8x256xf32>
    %c0_3 = arith.constant 0 : index
    %c0_4 = arith.constant 0 : index
    %9 = vector.load %arg1[%c0_3, %c0_4] : memref<8x256xf32, #tpu.memory_space<vmem>>, vector<8x256xf32>
    tpu.vector_store %arg1[%c0_3, %c0_4], %8 {strides = array<i32>} : memref<8x256xf32, #tpu.memory_space<vmem>>, vector<8x256xf32>,
    return
  }
}

</mosaic_0001>

<llo_original>
// kernel: tpu_custom_call.1
$region0: #{tpu_custom_call.1}
  #allocation0 [shape = 'u32[]', space=smem, size = 0x4, offset = 0x4, fixed_abs, tag = 'smem constant byte address 0x4 - core index']
  #allocation1 [shape = 'u32[144,128]{1,0:T(1,128)}', space=vmem, size = 0x12000, scoped, tag = 'internal scratch']
  %s0 = inlined_call_operand.hbm [shape: f32[8,256], index: 0, kind: input, shape index: {}]
  %s1 = inlined_call_operand.hbm [shape: f32[8,256], index: 1, kind: output, shape index: {}]
  %s2 = sld [smem:[#allocation0]]
  $region18: #{tpu_custom_call.1} parent=0
    _
  %s4 = ssub.s32 1, %s2
  %s5 = scalar_select 0, %s4, %s2
  $region1: #{tpu_custom_call.1} parent=0
    #allocation2 [shape = 'u8[8192]{0}', space=vmem, size = 0x2000, scoped, tag = 'input window, operand 0, single buffered']
    #allocation3 [shape = 's32[1]{0}', space=sflag, size = 0x4, scoped, tag = 'scoped memory for tpu_custom_call.1']
    #allocation4 [shape = 's32[1]{0}', space=sflag, size = 0x4, scoped, tag = 'scoped memory for tpu_custom_call.1']
    #allocation5 [shape = 'u8[8192]{0}', space=vmem, size = 0x2000, scoped, tag = 'output window, operand 0, single buffered']
    %6 = vsyncpa [#allocation3], 0
    %7 = vsyncpa [#allocation4], 0
    // Predicated region
    $region2: #{tpu_custom_call.1} parent=1 // pred_check
      _
    $region3: #{tpu_custom_call.1} parent=1 // pred_check_branch
      %9 = sbr.rel (0) target = $region5
    $region4: #{tpu_custom_call.1} parent=1 // pred_region
      %s11 = ssub.s32 256, 256
      %12 = vsyncadd [#allocation3], %s11
      %s14 = sshll.u32 [#allocation2], 4
      %s15 = int_to_ptr.vmem [resolvable:$true] %s14
      %17 = dma.hbm_to_vmem [thread:$0]  %s0, 256, %s15, [#allocation3]
    $region5: #{tpu_custom_call.1} parent=1 // pred_fallthru
      _
    // Predicated region
    $region6: #{tpu_custom_call.1} parent=1 // pred_check
      _
    $region7: #{tpu_custom_call.1} parent=1 // pred_check_branch
      %19 = sbr.rel (0) target = $region9
    $region8: #{tpu_custom_call.1} parent=1 // pred_region
      %20 = dma.done [#allocation3], 256
    $region9: #{tpu_custom_call.1} parent=1 // pred_fallthru
      _
    %v21 = vld [vmem:[#allocation2] sm:$0xff]
    %v22 = vld [vmem:[#allocation2 + $0x8] sm:$0xff]
    %v23 = vmax.f32 %v21, 1e-06
    %v24 = vmax.f32 %v22, 1e-06
    %v25 = vlog2.pop %v23
    %v26 = vmul.f32 %v25, 0.6931472
    %v27 = vlog2.pop %v24
    %v28 = vmul.f32 %v27, 0.6931472
    %v29 = vmul.f32 %v26, -2.259
    %v30 = vmul.f32 %v28, -2.259
    %v31 = vadd.f32 %v29, 4.022311
    %v32 = vadd.f32 %v30, 4.022311
    %v33 = vmul.f32 %v31, 1.442695
    %v34 = vpow.pop %v33
    %v35 = vmul.f32 %v32, 1.442695
    %v36 = vpow.pop %v35
    %37 = vst [vmem:[#allocation5] sm:$0xff] %v34
    %38 = vst [vmem:[#allocation5 + $0x8] sm:$0xff] %v36
    // Predicated region
    $region10: #{tpu_custom_call.1} parent=1 // pred_check
      _
    $region11: #{tpu_custom_call.1} parent=1 // pred_check_branch
      %40 = sbr.rel (0) target = $region13
    $region12: #{tpu_custom_call.1} parent=1 // pred_region
      %s42 = ssub.s32 256, 256
      %43 = vsyncadd [#allocation4], %s42
      %s45 = sshll.u32 [#allocation5], 4
      %s46 = int_to_ptr.vmem [resolvable:$true] %s45
      %48 = dma.vmem_to_hbm [thread:$0]  %s46, 256, %s1, [#allocation4]
    $region13: #{tpu_custom_call.1} parent=1 // pred_fallthru
      _
    // Predicated region
    $region14: #{tpu_custom_call.1} parent=1 // pred_check
      _
    $region15: #{tpu_custom_call.1} parent=1 // pred_check_branch
      %50 = sbr.rel (0) target = $region17
    $region16: #{tpu_custom_call.1} parent=1 // pred_region
      %51 = dma.done [#allocation4], 256
    $region17: #{tpu_custom_call.1} parent=1 // pred_fallthru
      _
    %52 = vsyncpa [#allocation3], 1
    %53 = vsyncpa [#allocation4], 1

</llo_original>
